<compile_context>
chip_gen: v7x
topology: tpu7x:2x2x1
jax: 0.10.0
libtpu: 0.0.40
codegen_flags: <defaults>
</compile_context>

<pallas_src>
import jax
import jax.numpy as jnp
from jax.experimental import pallas as pl
from jax.experimental.pallas import tpu as pltpu

LN_EPS = 1e-12


def _make_kernel(TS, resident):
    def kernel(x_ref, pos_ref, gamma_ref, beta_ref, o_ref):
        # x_ref / o_ref: (TS, H) sequence tile of one batch element (batch squeezed)
        # pos_ref: (max_pos, H) resident table (resident=True) or (TS, H) tile
        # gamma_ref / beta_ref: (1, H) LayerNorm affine params (resident)
        x = x_ref[...].astype(jnp.float32)
        if resident:
            start = pl.multiple_of(pl.program_id(1) * TS, TS)
            pos = pos_ref[pl.ds(start, TS), :].astype(jnp.float32)
        else:
            pos = pos_ref[...].astype(jnp.float32)

        e = x + pos                                          # (TS, H)

        # Two-pass LayerNorm statistics (matches the PyTorch reference; the
        # second pass over e is free VPU/XLU filler under the HBM pipeline).
        u = jnp.mean(e, axis=-1, keepdims=True)              # (TS, 1)
        d = e - u
        s = jnp.mean(d * d, axis=-1, keepdims=True)          # biased variance
        y = d * jax.lax.rsqrt(s + LN_EPS)

        gamma = gamma_ref[...].astype(jnp.float32)           # (1, H) broadcast
        beta = beta_ref[...].astype(jnp.float32)
        o_ref[...] = (gamma * y + beta).astype(o_ref.dtype)

    return kernel


def _vmem_limit_bytes():
    """Generation-aware scoped-VMEM limit: 3/4 of physical VMEM per core,
    capped at 96 MiB (v5e/v6e -> 96 MiB, v7x 64 MiB/TC -> 48 MiB)."""
    try:
        cap = int(pltpu.get_tpu_info().vmem_capacity_bytes)
    except Exception:
        cap = 64 << 20  # conservative (v7x-sized) fallback
    return min((cap * 3) // 4, 96 << 20)


def _choose_seq_tile(S, H, itemsize, target_bytes):
    """Largest dtype-aligned sequence tile that divides S with one (TS, H)
    input block near target_bytes. Falls back to the full S (a block dim equal
    to the full array dim is always legal)."""
    row_align = max(8, 32 // max(1, itemsize))   # f32: 8, bf16: 16, int8/fp8: 32
    cap_rows = max(row_align, target_bytes // max(1, H * itemsize))
    best = None
    t = row_align
    limit = min(S, cap_rows)
    while t <= limit:
        if S % t == 0:
            best = t
        t += row_align
    return best if best is not None else S


def position_embeddings_forward(input_states, pos_emb_table, ln_weight, ln_bias):
    """input_states: [B, S, H]; pos_emb_table: [max_pos, H]; ln_*: [H]."""
    B, S, H = input_states.shape
    max_pos, H_tbl = pos_emb_table.shape
    if H_tbl != H:
        raise ValueError("hidden size mismatch between input and embedding table")
    if S > max_pos:
        raise ValueError(
            f"sequence length {S} exceeds max_position_embeddings {max_pos}")

    itemsize = jnp.dtype(input_states.dtype).itemsize
    table_bytes = max_pos * H * jnp.dtype(pos_emb_table.dtype).itemsize

    vmem_limit = _vmem_limit_bytes()
    # Resident table path if the whole table comfortably fits in VMEM
    # (budgeting 2x for Pallas' default input double-buffering).
    resident = table_bytes <= min(8 << 20, vmem_limit // 4)

    # Block budget: ~4x input-dtype blocks (double-buffered x + out) plus
    # ~8x-equivalent for f32 temporaries (e, d, y, ...) plus the table.
    reserved = 2 * table_bytes if resident else 0
    target_bytes = min(8 << 20, max(1 << 20, (vmem_limit - reserved) // 12))

    TS = _choose_seq_tile(S, H, itemsize, target_bytes)
    num_s_tiles = S // TS

    gamma = ln_weight.reshape(1, H)
    beta = ln_bias.reshape(1, H)

    if resident:
        # Whole table lives in VMEM once; batch leads so v7x megacore shards it.
        kernel = _make_kernel(TS, resident=True)
        grid = (B, num_s_tiles)
        in_specs = [
            pl.BlockSpec((None, TS, H), lambda b, s: (b, s, 0)),
            pl.BlockSpec((max_pos, H), lambda b, s: (0, 0)),   # resident table
            pl.BlockSpec((1, H), lambda b, s: (0, 0)),
            pl.BlockSpec((1, H), lambda b, s: (0, 0)),
        ]
        out_specs = pl.BlockSpec((None, TS, H), lambda b, s: (b, s, 0))
        pos_arg = pos_emb_table
    else:
        # Table too big for VMEM: tile it per-seq-block and put batch on the
        # inner grid axis so the pos block index is constant across consecutive
        # steps (Pallas skips the re-DMA -> pos traffic is S*H, not B*S*H).
        if (TS % 8 != 0) and (TS != max_pos):
            # Rare awkward-S fallback: make the table's leading dim equal the
            # block dim so the (8,128) block constraint is satisfied.
            pos_arg = jax.lax.slice(pos_emb_table, (0, 0), (S, H))
        else:
            pos_arg = pos_emb_table
        kernel = _make_kernel(TS, resident=False)
        grid = (num_s_tiles, B)
        in_specs = [
            pl.BlockSpec((None, TS, H), lambda s, b: (b, s, 0)),
            pl.BlockSpec((TS, H), lambda s, b: (s, 0)),
            pl.BlockSpec((1, H), lambda s, b: (0, 0)),
            pl.BlockSpec((1, H), lambda s, b: (0, 0)),
        ]
        out_specs = pl.BlockSpec((None, TS, H), lambda s, b: (b, s, 0))

    # NOTE: for best store throughput keep H a multiple of 128 in real models
    # (BERT H=768 is fine); tiny H only appears in this smoke test.
    # TODO(synk): dropout is a no-op in inference; training-mode dropout (RNG
    # mask via pltpu.prng_seed/prng_random_bits) is not implemented here.
    return pl.pallas_call(
        kernel,
        out_shape=jax.ShapeDtypeStruct((B, S, H), input_states.dtype),
        grid_spec=pltpu.PrefetchScalarGridSpec(
            num_scalar_prefetch=0,
            grid=grid,
            in_specs=in_specs,
            out_specs=out_specs,
        ),
        compiler_params=pltpu.CompilerParams(
            dimension_semantics=("parallel", "parallel"),
            vmem_limit_bytes=int(vmem_limit),
        ),
    )(input_states, pos_arg, gamma, beta)


def _reference(input_states, pos_emb_table, ln_weight, ln_bias):
    B, S, H = input_states.shape
    e = input_states.astype(jnp.float32) + pos_emb_table[:S][None]
    u = jnp.mean(e, axis=-1, keepdims=True)
    s = jnp.mean((e - u) ** 2, axis=-1, keepdims=True)
    y = (e - u) / jnp.sqrt(s + LN_EPS)
    return ln_weight * y + ln_bias


if __name__ == "__main__":
    # Small shapes consistent with the module: batch=2, seq=8, hidden=32.
    B, S, H = 2, 8, 32
    MAX_POS = 16

    key = jax.random.PRNGKey(0)
    k1, k2 = jax.random.split(key)
    input_states = jax.random.normal(k1, (B, S, H), dtype=jnp.float32)
    # nn.Embedding weight ~ N(0,1); deterministic init here.
    pos_emb_table = jax.random.normal(k2, (MAX_POS, H), dtype=jnp.float32)
    # BertLayerNorm: weight = ones, bias = zeros.
    ln_weight = jnp.ones((H,), dtype=jnp.float32)
    ln_bias = jnp.zeros((H,), dtype=jnp.float32)

    out = position_embeddings_forward(input_states, pos_emb_table, ln_weight, ln_bias)
    out = jax.block_until_ready(out)

    ref = _reference(input_states, pos_emb_table, ln_weight, ln_bias)
    assert out.shape == (B, S, H)
    assert jnp.allclose(out, ref, atol=1e-5, rtol=1e-5), "mismatch vs reference"

    print("KERNEL_OK")
</pallas_src>

<mosaic_0001>
module attributes {stable_mosaic.version = 11 : i64} {
  func.func @kernel(%arg0: i32, %arg1: i32, %arg2: memref<1x8x32xf32, #tpu.memory_space<vmem>>, %arg3: memref<16x32xf32, #tpu.memory_space<vmem>>, %arg4: memref<1x32xf32, #tpu.memory_space<vmem>>, %arg5: memref<1x32xf32, #tpu.memory_space<vmem>>, %arg6: memref<1x8x32xf32, #tpu.memory_space<vmem>>) attributes {dimension_semantics = [#tpu.dimension_semantics<parallel>, #tpu.dimension_semantics<parallel>], iteration_bounds = array<i64: 2, 1>, scalar_prefetch = 0 : i64, scratch_operands = 0 : i64, tpu.core_type = #tpu.core_type<tc>, window_params = [{transform_indices = @transform_0, window_bounds = array<i64: 1, 8, 32>}, {pipeline_mode = #tpu.pipeline_mode<synchronous>, transform_indices = @transform_1, window_bounds = array<i64: 16, 32>}, {pipeline_mode = #tpu.pipeline_mode<synchronous>, transform_indices = @transform_2, window_bounds = array<i64: 1, 32>}, {pipeline_mode = #tpu.pipeline_mode<synchronous>, transform_indices = @transform_3, window_bounds = array<i64: 1, 32>}, {transform_indices = @transform_4, window_bounds = array<i64: 1, 8, 32>}]} {
    %c0 = arith.constant 0 : index
    %c0_0 = arith.constant 0 : index
    %c0_1 = arith.constant 0 : index
    %0 = vector.load %arg2[%c0, %c0_0, %c0_1] : memref<1x8x32xf32, #tpu.memory_space<vmem>>, vector<1x8x32xf32>
    %1 = vector.shape_cast %0 : vector<1x8x32xf32> to vector<8x32xf32>
    %c8_i32 = arith.constant 8 : i32
    %2 = arith.muli %arg1, %c8_i32 : i32
    %3 = tpu.assume_multiple %2, 8 : i32
    %4 = arith.index_cast %3 : i32 to index
    %c0_2 = arith.constant 0 : index
    %5 = vector.load %arg3[%4, %c0_2] : memref<16x32xf32, #tpu.memory_space<vmem>>, vector<8x32xf32>
    %6 = arith.addf %1, %5 : vector<8x32xf32>
    %cst = arith.constant dense<0.000000e+00> : vector<8xf32>
    %7 = vector.multi_reduction <add>, %6, %cst [1] : vector<8x32xf32> to vector<8xf32>
    %8 = vector.shape_cast %7 : vector<8xf32> to vector<8x1xf32>
    %cst_3 = arith.constant 3.200000e+01 : f32
    %9 = vector.broadcast %cst_3 : f32 to vector<8x1xf32>
    %10 = arith.divf %8, %9 : vector<8x1xf32>
    %11 = vector.broadcast %10 : vector<8x1xf32> to vector<8x32xf32>
    %12 = arith.subf %6, %11 : vector<8x32xf32>
    %13 = arith.mulf %12, %12 : vector<8x32xf32>
    %cst_4 = arith.constant dense<0.000000e+00> : vector<8xf32>
    %14 = vector.multi_reduction <add>, %13, %cst_4 [1] : vector<8x32xf32> to vector<8xf32>
    %15 = vector.shape_cast %14 : vector<8xf32> to vector<8x1xf32>
    %cst_5 = arith.constant 3.200000e+01 : f32
    %16 = vector.broadcast %cst_5 : f32 to vector<8x1xf32>
    %17 = arith.divf %15, %16 : vector<8x1xf32>
    %cst_6 = arith.constant 9.99999996E-13 : f32
    %18 = vector.broadcast %cst_6 : f32 to vector<8x1xf32>
    %19 = arith.addf %17, %18 : vector<8x1xf32>
    %20 = math.rsqrt %19 : vector<8x1xf32>
    %21 = vector.broadcast %20 : vector<8x1xf32> to vector<8x32xf32>
    %22 = arith.mulf %12, %21 : vector<8x32xf32>
    %c0_7 = arith.constant 0 : index
    %c0_8 = arith.constant 0 : index
    %23 = vector.load %arg4[%c0_7, %c0_8] : memref<1x32xf32, #tpu.memory_space<vmem>>, vector<1x32xf32>
    %c0_9 = arith.constant 0 : index
    %c0_10 = arith.constant 0 : index
    %24 = vector.load %arg5[%c0_9, %c0_10] : memref<1x32xf32, #tpu.memory_space<vmem>>, vector<1x32xf32>
    %25 = vector.broadcast %23 : vector<1x32xf32> to vector<8x32xf32>
    %26 = arith.mulf %25, %22 : vector<8x32xf32>
    %27 = vector.broadcast %24 : vector<1x32xf32> to vector<8x32xf32>
    %28 = arith.addf %26, %27 : vector<8x32xf32>
    %c0_11 = arith.constant 0 : index
    %c0_12 = arith.constant 0 : index
    %c0_13 = arith.constant 0 : index
    %29 = vector.load %arg6[%c0_11, %c0_12, %c0_13] : memref<1x8x32xf32, #tpu.memory_space<vmem>>, vector<1x8x32xf32>
    %30 = vector.shape_cast %29 : vector<1x8x32xf32> to vector<8x32xf32>
    %31 = vector.shape_cast %28 : vector<8x32xf32> to vector<1x8x32xf32>
    tpu.vector_store %arg6[%c0_11, %c0_12, %c0_13], %31 {strides = array<i32>} : memref<1x8x32xf32, #tpu.memory_space<vmem>>, vector<1x8x32xf32>,
    return
  }
  func.func @transform_0(%arg0: i32, %arg1: i32) -> (i32, i32, i32) {
    %c0_i32 = arith.constant 0 : i32
    %c0_i32_0 = arith.constant 0 : i32
    return %arg0, %arg1, %c0_i32 : i32, i32, i32
  }
  func.func @transform_1(%arg0: i32, %arg1: i32) -> (i32, i32) {
    %c0_i32 = arith.constant 0 : i32
    %c0_i32_0 = arith.constant 0 : i32
    %c0_i32_1 = arith.constant 0 : i32
    return %c0_i32, %c0_i32_0 : i32, i32
  }
  func.func @transform_2(%arg0: i32, %arg1: i32) -> (i32, i32) {
    %c0_i32 = arith.constant 0 : i32
    %c0_i32_0 = arith.constant 0 : i32
    %c0_i32_1 = arith.constant 0 : i32
    return %c0_i32, %c0_i32_0 : i32, i32
  }
  func.func @transform_3(%arg0: i32, %arg1: i32) -> (i32, i32) {
    %c0_i32 = arith.constant 0 : i32
    %c0_i32_0 = arith.constant 0 : i32
    %c0_i32_1 = arith.constant 0 : i32
    return %c0_i32, %c0_i32_0 : i32, i32
  }
  func.func @transform_4(%arg0: i32, %arg1: i32) -> (i32, i32, i32) {
    %c0_i32 = arith.constant 0 : i32
    %c0_i32_0 = arith.constant 0 : i32
    return %arg0, %arg1, %c0_i32 : i32, i32, i32
  }
}

</mosaic_0001>

<llo_original>
// kernel: tpu_custom_call.1
$region0: #{tpu_custom_call.1}
  #allocation0 [shape = 'u32[]', space=smem, size = 0x4, offset = 0x4, fixed_abs, tag = 'smem constant byte address 0x4 - core index']
  #allocation1 [shape = 'u32[144,128]{1,0:T(1,128)}', space=vmem, size = 0x12000, scoped, tag = 'internal scratch']
  %s0 = inlined_call_operand.hbm [shape: f32[2,8,32], index: 0, kind: input, shape index: {}]
  %s1 = inlined_call_operand.hbm [shape: f32[16,32], index: 1, kind: input, shape index: {}]
  %s2 = inlined_call_operand.vmem [shape: f32[1,32], index: 2, kind: input, shape index: {}]
  %s3 = inlined_call_operand.vmem [shape: f32[1,32], index: 3, kind: input, shape index: {}]
  %s4 = inlined_call_operand.hbm [shape: f32[2,8,32], index: 4, kind: output, shape index: {}]
  %s5 = sld [smem:[#allocation0]]
  $region57: #{tpu_custom_call.1} parent=0
    _
  %s7 = ssub.s32 1, %s5
  %s8 = scalar_select 0, %s7, %s5
  $region1: #{tpu_custom_call.1} parent=0
    #allocation2 [shape = 'u8[8192]{0}', space=vmem, size = 0x2000, scoped, tag = 'input window, operand 0']
    #allocation3 [shape = 's32[2]{0}', space=sflag, size = 0x8, scoped, tag = 'scoped memory for tpu_custom_call.1']
    #allocation4 [shape = 's32[2]{0}', space=sflag, size = 0x8, scoped, tag = 'scoped memory for tpu_custom_call.1']
    #allocation5 [shape = 'u8[8192]{0}', space=vmem, size = 0x2000, scoped, tag = 'input window, operand 1, single buffered']
    #allocation6 [shape = 's32[1]{0}', space=sflag, size = 0x4, scoped, tag = 'scoped memory for tpu_custom_call.1']
    #allocation7 [shape = 'u8[8192]{0}', space=vmem, size = 0x2000, scoped, tag = 'output window, operand 0']
    %9 = vsyncpa [#allocation3], 0
    %s10 = scalar_lea.sflag [#allocation3], 1
    %11 = vsyncpa %s10, 0
    %12 = vsyncpa [#allocation6], 0
    %13 = vsyncpa [#allocation4], 0
    %s14 = scalar_lea.sflag [#allocation4], 1
    %15 = vsyncpa %s14, 0
    loop: start=0, step=1, limit=4
    $region2: #{tpu_custom_call.1} parent=1 // loop_pre_header
      _
    $region3: #{tpu_custom_call.1} parent=1 // loop_header
      %s17 = sphi 0, %s21
      %p18 = scmp.ge.s32.totalorder %s17, 4
      %s24 = sphi 0, %s36
      %s25 = sphi 0, %s32
      %s26 = sphi 0, %s24
      %s27 = sphi 0, %s25
      %s28 = sphi 0, %s26
      %s29 = sphi 0, %s27
      %s41 = sphi 0, %s43
      %s44 = sphi 0, %s41
      %s45 = sphi 0, %s44
      %s61 = sphi 0, %s45
      %s65 = sphi 0, %s65
      %s67 = sphi 0, %s65
      %s68 = sphi 0, %s67
      %s82 = sphi 0, %s68
      %s86 = sphi 0, %s86
      %s88 = sphi 0, %s86
      %s89 = sphi 0, %s88
      %s103 = sphi 0, %s89
      %s107 = sphi 0, %s107
      %s109 = sphi 0, %s107
      %s110 = sphi 0, %s109
      %s124 = sphi 0, %s110
      %s132 = sphi 0, %s134
      %s135 = sphi 0, %s132
      %s136 = sphi 0, %s135
      %s152 = sphi 0, %s136
    $region4: #{tpu_custom_call.1} parent=1 // loop_header_branch
      %20 = sbr.rel (%p18) target = $region8
    $region5: #{tpu_custom_call.1} parent=1 // loop_body
      %s22 = ssub.s32 %s17, 1
      %s23 = ssub.s32 %s17, 2
      %s30 = sadd.s32 1, %s25
      %p31 = scmp.ge.s32.totalorder %s30, 1
      %s32 = scalar_select %p31, 0, %s30
      %s33 = sadd.s32 1, %s24
      %s34 = scalar_select %p31, %s33, %s24
      %p35 = scmp.ge.s32.totalorder %s34, 2
      %s36 = scalar_select %p35, 0, %s34
      %s37 = ssub.s32 %s24, %s36
      %s38 = ssub.s32 %s25, %s32
      %s39 = sor.u32 %s37, %s38
      %p40 = scmp.eq.s32.totalorder %s39, 0
      %s42 = sadd.s32 %s41, 1
      %s43 = scalar_select %p40, %s41, %s42
      %p46 = pneg %p40
      %p47 = scmp.eq.s32.totalorder %s17, 1
      %p48 = por %p46, %p47
      %p49 = scmp.ne.s32.totalorder %s41, %s44
      %p50 = scmp.eq.s32.totalorder %s17, 0
      %p51 = por %p49, %p50
      %p52 = scmp.ne.s32.totalorder %s41, %s44
      %p53 = scmp.eq.s32.totalorder %s22, 1
      %p54 = por %p52, %p53
      %p55 = scmp.ne.s32.totalorder %s44, %s45
      %p56 = scmp.eq.s32.totalorder %s22, 0
      %p57 = por %p55, %p56
      %p58 = scmp.ne.s32.totalorder %s44, %s45
      %p59 = scmp.eq.s32.totalorder %s23, 1
      %p60 = por %p58, %p59
      %p62 = scmp.ne.s32.totalorder %s45, %s61
      %p63 = scmp.eq.s32.totalorder %s23, 0
      %p64 = por %p62, %p63
      %s66 = sadd.s32 %s65, 1
      %p69 = scmp.eq.s32.totalorder %s17, 1
      %p70 = scmp.ne.s32.totalorder %s65, %s67
      %p71 = scmp.eq.s32.totalorder %s17, 0
      %p72 = por %p70, %p71
      %p73 = scmp.ne.s32.totalorder %s65, %s67
      %p74 = scmp.eq.s32.totalorder %s22, 1
      %p75 = por %p73, %p74
      %p76 = scmp.ne.s32.totalorder %s67, %s68
      %p77 = scmp.eq.s32.totalorder %s22, 0
      %p78 = por %p76, %p77
      %p79 = scmp.ne.s32.totalorder %s67, %s68
      %p80 = scmp.eq.s32.totalorder %s23, 1
      %p81 = por %p79, %p80
      %p83 = scmp.ne.s32.totalorder %s68, %s82
      %p84 = scmp.eq.s32.totalorder %s23, 0
      %p85 = por %p83, %p84
      %s87 = sadd.s32 %s86, 1
      %p90 = scmp.eq.s32.totalorder %s17, 1
      %p91 = scmp.ne.s32.totalorder %s86, %s88
      %p92 = scmp.eq.s32.totalorder %s17, 0
      %p93 = por %p91, %p92
      %p94 = scmp.ne.s32.totalorder %s86, %s88
      %p95 = scmp.eq.s32.totalorder %s22, 1
      %p96 = por %p94, %p95
      %p97 = scmp.ne.s32.totalorder %s88, %s89
      %p98 = scmp.eq.s32.totalorder %s22, 0
      %p99 = por %p97, %p98
      %p100 = scmp.ne.s32.totalorder %s88, %s89
      %p101 = scmp.eq.s32.totalorder %s23, 1
      %p102 = por %p100, %p101
      %p104 = scmp.ne.s32.totalorder %s89, %s103
      %p105 = scmp.eq.s32.totalorder %s23, 0
      %p106 = por %p104, %p105
      %s108 = sadd.s32 %s107, 1
      %p111 = scmp.eq.s32.totalorder %s17, 1
      %p112 = scmp.ne.s32.totalorder %s107, %s109
      %p113 = scmp.eq.s32.totalorder %s17, 0
      %p114 = por %p112, %p113
      %p115 = scmp.ne.s32.totalorder %s107, %s109
      %p116 = scmp.eq.s32.totalorder %s22, 1
      %p117 = por %p115, %p116
      %p118 = scmp.ne.s32.totalorder %s109, %s110
      %p119 = scmp.eq.s32.totalorder %s22, 0
      %p120 = por %p118, %p119
      %p121 = scmp.ne.s32.totalorder %s109, %s110
      %p122 = scmp.eq.s32.totalorder %s23, 1
      %p123 = por %p121, %p122
      %p125 = scmp.ne.s32.totalorder %s110, %s124
      %p126 = scmp.eq.s32.totalorder %s23, 0
      %p127 = por %p125, %p126
      %s128 = ssub.s32 %s24, %s36
      %s129 = ssub.s32 %s25, %s32
      %s130 = sor.u32 %s128, %s129
      %p131 = scmp.eq.s32.totalorder %s130, 0
      %s133 = sadd.s32 %s132, 1
      %s134 = scalar_select %p131, %s132, %s133
      %p137 = pneg %p131
      %p138 = scmp.eq.s32.totalorder %s17, 1
      %p139 = por %p137, %p138
      %p140 = scmp.ne.s32.totalorder %s132, %s135
      %p141 = scmp.eq.s32.totalorder %s17, 0
      %p142 = por %p140, %p141
      %p143 = scmp.ne.s32.totalorder %s132, %s135
      %p144 = scmp.eq.s32.totalorder %s22, 1
      %p145 = por %p143, %p144
      %p146 = scmp.ne.s32.totalorder %s135, %s136
      %p147 = scmp.eq.s32.totalorder %s22, 0
      %p148 = por %p146, %p147
      %p149 = scmp.ne.s32.totalorder %s135, %s136
      %p150 = scmp.eq.s32.totalorder %s23, 1
      %p151 = por %p149, %p150
      %p153 = scmp.ne.s32.totalorder %s136, %s152
      %p154 = scmp.eq.s32.totalorder %s23, 0
      %p155 = por %p153, %p154
      %p156 = scmp.le.s32.totalorder 1, %s17
      %p157 = scmp.lt.s32.totalorder %s17, 3
      %p158 = pnand %p156, %p157
      %p159 = pneg %p158
      // Predicated region
      $region9: #{tpu_custom_call.1} parent=5 // pred_check
        _
      $region10: #{tpu_custom_call.1} parent=5 // pred_check_branch
        %161 = sbr.rel (%p158) target = $region12
      $region11: #{tpu_custom_call.1} parent=5 // pred_region
        %s162 = ssub.s32 %s17, 1
        // Predicated region
        $region13: #{tpu_custom_call.1} parent=11 // pred_check
          %p163 = pneg %p78
        $region14: #{tpu_custom_call.1} parent=11 // pred_check_branch
          %165 = sbr.rel (%p163) target = $region16
        $region15: #{tpu_custom_call.1} parent=11 // pred_region
          %s167 = ssub.s32 256, 256
          %168 = vsyncadd [#allocation6], %s167
          %s169 = sshll.u32 [#allocation5], 4
          %s170 = int_to_ptr.vmem [resolvable:$true] %s169
          %175 = dma.hbm_to_vmem [thread:$0]  %s1, 256, %s170, [#allocation6], 128, 128, 8
        $region16: #{tpu_custom_call.1} parent=11 // pred_fallthru
          _
        // Predicated region
        $region17: #{tpu_custom_call.1} parent=11 // pred_check
          %p176 = pneg %p99
        $region18: #{tpu_custom_call.1} parent=11 // pred_check_branch
          %178 = sbr.rel (%p176) target = $region20
        $region19: #{tpu_custom_call.1} parent=11 // pred_region
          _
        $region20: #{tpu_custom_call.1} parent=11 // pred_fallthru
          _
        // Predicated region
        $region21: #{tpu_custom_call.1} parent=11 // pred_check
          %p179 = pneg %p120
        $region22: #{tpu_custom_call.1} parent=11 // pred_check_branch
          %181 = sbr.rel (%p179) target = $region24
        $region23: #{tpu_custom_call.1} parent=11 // pred_region
          _
        $region24: #{tpu_custom_call.1} parent=11 // pred_fallthru
          _
      $region12: #{tpu_custom_call.1} parent=5 // pred_fallthru
        _
      %p182 = scmp.lt.s32.totalorder %s17, 2
      // Predicated region
      $region25: #{tpu_custom_call.1} parent=5 // pred_check
        %p183 = pneg %p182
      $region26: #{tpu_custom_call.1} parent=5 // pred_check_branch
        %185 = sbr.rel (%p183) target = $region28
      $region27: #{tpu_custom_call.1} parent=5 // pred_region
        // Predicated region
        $region29: #{tpu_custom_call.1} parent=27 // pred_check
          %p186 = pneg %p51
        $region30: #{tpu_custom_call.1} parent=27 // pred_check_branch
          %188 = sbr.rel (%p186) target = $region32
        $region31: #{tpu_custom_call.1} parent=27 // pred_region
          %s189 = sand.u32 %s41, 1
          %s190 = scalar_lea.sflag [#allocation3], %s189
          %s191 = sand.u32 %s41, 1
          %s192 = smul.addr %s191, 8
          %s193 = scalar_lea.vmem [#allocation2], %s192
          %s195 = ssub.s32 128, 128
          %196 = vsyncadd %s190, %s195
          %s197 = sadd.s32 %s25, %s24
          %s198 = smul.addr %s197, 128
          %s199 = scalar_lea.hbm %s0, %s198
          %s201 = sshll.u32 %s193, 4
          %s202 = int_to_ptr.vmem [resolvable:$true] %s201
          %204 = dma.hbm_to_vmem [thread:$0]  %s199, 128, %s202, %s190
        $region32: #{tpu_custom_call.1} parent=27 // pred_fallthru
          _
      $region28: #{tpu_custom_call.1} parent=5 // pred_fallthru
        _
      %p205 = scmp.le.s32.totalorder 1, %s17
      %p206 = scmp.lt.s32.totalorder %s17, 3
      %p207 = pnand %p205, %p206
      %p208 = pneg %p207
      // Predicated region
      $region33: #{tpu_custom_call.1} parent=5 // pred_check
        _
      $region34: #{tpu_custom_call.1} parent=5 // pred_check_branch
        %210 = sbr.rel (%p207) target = $region36
      $region35: #{tpu_custom_call.1} parent=5 // pred_region
        %s211 = ssub.s32 %s17, 1
        %s212 = sand.u32 %s44, 1
        %s213 = scalar_lea.sflag [#allocation3], %s212
        %s214 = sand.u32 %s44, 1
        %s215 = smul.addr %s214, 8
        %s216 = scalar_lea.vmem [#allocation2], %s215
        // Predicated region
        $region37: #{tpu_custom_call.1} parent=35 // pred_check
          %p217 = pneg %p57
        $region38: #{tpu_custom_call.1} parent=35 // pred_check_branch
          %219 = sbr.rel (%p217) target = $region40
        $region39: #{tpu_custom_call.1} parent=35 // pred_region
          %220 = dma.done %s213, 128
        $region40: #{tpu_custom_call.1} parent=35 // pred_fallthru
          _
        // Predicated region
        $region41: #{tpu_custom_call.1} parent=35 // pred_check
          %p221 = pneg %p78
        $region42: #{tpu_custom_call.1} parent=35 // pred_check_branch
          %223 = sbr.rel (%p221) target = $region44
        $region43: #{tpu_custom_call.1} parent=35 // pred_region
          %224 = dma.done [#allocation6], 256
        $region44: #{tpu_custom_call.1} parent=35 // pred_fallthru
          _
        %s225 = sand.u32 %s44, 1
        %s226 = scalar_lea.sflag [#allocation3], %s225
        %s227 = sand.u32 %s44, 1
        %s228 = smul.addr %s227, 8
        %s229 = scalar_lea.vmem [#allocation2], %s228
        %p230 = pneg %p57
        %p231 = pneg %p54
        %p232 = pneg %p78
        %p233 = pneg %p75
        %p234 = pneg %p99
        %p235 = pneg %p96
        %p236 = pneg %p120
        %p237 = pneg %p117
        %p238 = pneg %p148
        %p239 = pneg %p145
        %s240 = sand.u32 %s135, 1
        %s241 = scalar_lea.sflag [#allocation4], %s240
        %s242 = sand.u32 %s135, 1
        %s243 = smul.addr %s242, 8
        %s244 = scalar_lea.vmem [#allocation7], %s243
        %v245 = vld [vmem:[%s216] sm:$0xff]
        %s246 = smul.u32 %s27, 8
        %s247 = scalar_lea.vmem [#allocation5], %s246
        %v248 = vld [vmem:[%s247] sm:$0xff]
        %v249 = vadd.f32 %v245, %v248
        %vm250 = vcmask 261120
        %v251 = vsel %vm250, %v249, 0.0
        %252 = vadd.xlane.f32.xlu0 %v251
        %v253 = vpop.xlane.xlu0 %252
        %v254 = vrcp.pop 32.0
        %v255 = vmul.f32 %v253, %v254
        %v256 = vsub.f32 %v249, %v255
        %v257 = vmul.f32 %v256, %v256
        %v258 = vsel %vm250, %v257, 0.0
        %259 = vadd.xlane.f32.xlu0 %v258
        %v260 = vpop.xlane.xlu0 %259
        %v261 = vmul.f32 %v260, %v254
        %v262 = vadd.f32 %v261, 1e-12
        %v263 = vrsqrt.pop %v262
        %v264 = vmul.f32 %v256, %v263
        %v265 = vld [vmem:[%s2] sm:$0x1]
        %v266 = vld [vmem:[%s3] sm:$0x1]
        %v268 = vlaneseq
        %v269 = vshrl.u32 %v268, 7
        %v270 = vsub.s32 0, %v269
        %v271 = vrot.slane %v265, %v270
        %v273 = vmul.f32 %v271, %v264
        %v275 = vlaneseq
        %v276 = vshrl.u32 %v275, 7
        %v277 = vsub.s32 0, %v276
        %v278 = vrot.slane %v266, %v277
        %v280 = vadd.f32 %v273, %v278
        %281 = vst.msk [vmem:[%s244] sm:$0xff] %vm250, %v280
        %s282 = sand.u32 %s135, 1
        %s283 = scalar_lea.sflag [#allocation4], %s282
        %s284 = sand.u32 %s135, 1
        %s285 = smul.addr %s284, 8
        %s286 = scalar_lea.vmem [#allocation7], %s285
        // Predicated region
        $region45: #{tpu_custom_call.1} parent=35 // pred_check
          %p287 = pneg %p145
        $region46: #{tpu_custom_call.1} parent=35 // pred_check_branch
          %289 = sbr.rel (%p287) target = $region48
        $region47: #{tpu_custom_call.1} parent=35 // pred_region
          %s291 = ssub.s32 128, 128
          %292 = vsyncadd %s283, %s291
          %s293 = sadd.s32 %s27, %s26
          %s294 = smul.addr %s293, 128
          %s295 = scalar_lea.hbm %s4, %s294
          %s297 = sshll.u32 %s286, 4
          %s298 = int_to_ptr.vmem [resolvable:$true] %s297
          %300 = dma.vmem_to_hbm [thread:$0]  %s298, 128, %s295, %s283
        $region48: #{tpu_custom_call.1} parent=35 // pred_fallthru
          _
      $region36: #{tpu_custom_call.1} parent=5 // pred_fallthru
        _
      %p301 = scmp.le.s32.totalorder 2, %s17
      // Predicated region
      $region49: #{tpu_custom_call.1} parent=5 // pred_check
        %p302 = pneg %p301
      $region50: #{tpu_custom_call.1} parent=5 // pred_check_branch
        %304 = sbr.rel (%p302) target = $region52
      $region51: #{tpu_custom_call.1} parent=5 // pred_region
        %s305 = ssub.s32 %s17, 2
        // Predicated region
        $region53: #{tpu_custom_call.1} parent=51 // pred_check
          %p306 = pneg %p151
        $region54: #{tpu_custom_call.1} parent=51 // pred_check_branch
          %308 = sbr.rel (%p306) target = $region56
        $region55: #{tpu_custom_call.1} parent=51 // pred_region
          %s309 = sand.u32 %s136, 1
          %s310 = scalar_lea.sflag [#allocation4], %s309
          %s311 = sand.u32 %s136, 1
          %s312 = smul.addr %s311, 8
          %s313 = scalar_lea.vmem [#allocation7], %s312
          %314 = dma.done %s310, 128
        $region56: #{tpu_custom_call.1} parent=51 // pred_fallthru
          _
      $region52: #{tpu_custom_call.1} parent=5 // pred_fallthru
        _
    $region6: #{tpu_custom_call.1} parent=1 // loop_footer
      %s21 = sadd.s32 1, %s17
    $region7: #{tpu_custom_call.1} parent=1 // loop_footer_branch
      %16 = sbr.rel target = $region3
    $region8: #{tpu_custom_call.1} parent=1 // loop_exit
      _
    %315 = vsyncpa [#allocation3], 1
    %s316 = scalar_lea.sflag [#allocation3], 1
    %317 = vsyncpa %s316, 1
    %318 = vsyncpa [#allocation6], 1
    %319 = vsyncpa [#allocation4], 1
    %s320 = scalar_lea.sflag [#allocation4], 1
    %321 = vsyncpa %s320, 1

</llo_original>
